<compile_context>
chip_gen: v5e
topology: v5e:2x2
jax: 0.10.0
libtpu: 0.0.40
codegen_flags: <defaults>
</compile_context>

<pallas_src>
import functools

import numpy as np
import jax
import jax.numpy as jnp
from jax.experimental import pallas as pl
from jax.experimental.pallas import tpu as pltpu


def _round_up(x, m):
    return ((x + m - 1) // m) * m


def _semi_sup_kernel(lp_ref, up_ref, ut_ref, t2d_ref, intr_ref, out_ref,
                     acc_d, acc_ob, acc_tb, *,
                     K, parents, n_valid, num_non_root, proj_w, bone_w):
    i = pl.program_id(0)
    tile_n = acc_d.shape[1]

    @pl.when(i == 0)
    def _init():
        acc_d[...] = jnp.zeros_like(acc_d)
        acc_ob[...] = jnp.zeros_like(acc_ob)
        acc_tb[...] = jnp.zeros_like(acc_tb)

    lp = lp_ref[...]        # (3K, tile_n) labeled pose   (rows: d*K + k)
    up = up_ref[...]        # (3K, tile_n) unlabeled pose
    ut = ut_ref[...]        # (3K, tile_n) unlabeled trajectory
    t2d = t2d_ref[...]      # (2K, tile_n) unlabeled 2D target
    intr = intr_ref[...]    # (9,  tile_n) intrinsics f(2) c(2) k(3) p(2)

    # Columns of this tile that correspond to real (unpadded) samples.
    col = jax.lax.broadcasted_iota(jnp.int32, (K, tile_n), 1) + i * tile_n
    valid = col < n_valid

    # ------------------------------------------------------------------
    # project_joints(unlabeled_pose + unlabeled_traj, intrinsics) + MPJPE
    # ------------------------------------------------------------------
    x = up + ut
    x0 = x[0:K, :]
    x1 = x[K:2 * K, :]
    z = x[2 * K:3 * K, :]
    inv_z = 1.0 / z                              # one reciprocal shared by x & y
    _xu = jnp.clip(x0 * inv_z, -1.0, 1.0)
    _yu = jnp.clip(x1 * inv_z, -1.0, 1.0)

    # slice intrinsics once per tile (sublane broadcast against (K, tile_n))
    fx = intr[0:1, :]
    fy = intr[1:2, :]
    cx = intr[2:3, :]
    cy = intr[3:4, :]
    k0 = intr[4:5, :]
    k1 = intr[5:6, :]
    k2 = intr[6:7, :]
    p0 = intr[7:8, :]
    p1 = intr[8:9, :]

    r2 = _xu * _xu + _yu * _yu
    r4 = r2 * r2
    r6 = r4 * r2
    radial = 1.0 + k0 * r2 + k1 * r4 + k2 * r6
    tan = p0 * _xu + p1 * _yu
    scale = radial + tan
    px = fx * (_xu * scale + p0 * r2) + cx       # (K, tile_n)
    py = fy * (_yu * scale + p1 * r2) + cy

    dx = px - t2d[0:K, :]
    dy = py - t2d[K:2 * K, :]
    dist = jnp.sqrt(dx * dx + dy * dy)           # (K, tile_n)
    acc_d[...] += jnp.where(valid, dist, 0.0)

    # ------------------------------------------------------------------
    # Bone lengths: static parent gather (unrolled sublane slices), VPU only.
    # ------------------------------------------------------------------
    def bone_len(a):                             # a: (3K, tile_n) -> (K, tile_n)
        sq = None
        for d in range(3):
            blk = a[d * K:(d + 1) * K, :]        # (K, tile_n)
            par = jnp.concatenate([blk[p:p + 1, :] for p in parents], axis=0)
            diff = blk - par
            sq = diff * diff if sq is None else sq + diff * diff
        return jnp.sqrt(sq)

    ob = bone_len(up)                            # output bone lengths
    tb = bone_len(lp)                            # target bone lengths
    acc_ob[...] += jnp.where(valid, ob, 0.0)
    acc_tb[...] += jnp.where(valid, tb, 0.0)

    # ------------------------------------------------------------------
    # Finalize: means, abs, loss weights, single (1, 2) store.
    # ------------------------------------------------------------------
    @pl.when(i == pl.num_programs(0) - 1)
    def _finalize():
        proj_loss = (jnp.sum(acc_d[...]) / float(n_valid * K)) * proj_w

        sum_ob = jnp.sum(acc_ob[...], axis=1, keepdims=True)     # (K, 1)
        sum_tb = jnp.sum(acc_tb[...], axis=1, keepdims=True)     # (K, 1)
        # Root joints (parent == self) contribute exactly 0 to both sums, so
        # summing over all K and dividing by num_non_root equals the PyTorch
        # mean over the non_root_indices selection.
        mean_diff = jnp.abs(sum_ob - sum_tb) * (1.0 / float(n_valid))
        bone_loss = (jnp.sum(mean_diff) / float(num_non_root)) * bone_w

        sel = jax.lax.broadcasted_iota(jnp.int32, (1, 2), 1)
        out_ref[...] = jnp.where(sel == 0, proj_loss, bone_loss)


class SemiSupervisionLossPallas:
    """JAX/Pallas equivalent of mmpose SemiSupervisionLoss.forward."""

    def __init__(self, joint_parents, projection_loss_weight=1.0,
                 bone_loss_weight=1.0, warmup_iterations=0, tile_n=2048):
        self.joint_parents = tuple(int(p) for p in joint_parents)
        self.projection_loss_weight = float(projection_loss_weight)
        self.bone_loss_weight = float(bone_loss_weight)
        self.warmup_iterations = int(warmup_iterations)
        self.num_iterations = 0
        self.tile_n = int(tile_n)
        self.num_non_root = sum(
            1 for i, p in enumerate(self.joint_parents) if p != i)

    def __call__(self, output, target):
        losses = {}
        self.num_iterations += 1
        if self.num_iterations <= self.warmup_iterations:
            return losses

        lp = jnp.asarray(output['labeled_pose'], jnp.float32)        # (N, K, 3)
        up = jnp.asarray(output['unlabeled_pose'], jnp.float32)      # (N, K, 3)
        ut = jnp.asarray(output['unlabeled_traj'], jnp.float32)      # (N, K, 3)
        t2d = jnp.asarray(target['unlabeled_target_2d'], jnp.float32)  # (N, K, 2)
        intr = jnp.asarray(target['intrinsics'], jnp.float32)        # (N, 4|9)

        N, K, D = up.shape
        assert D == 3 and K == len(self.joint_parents)

        # TODO(synk): ideally the producer emits the (D*K, N) lane-dense layout
        # directly so these relayout transposes (one HBM pass each) disappear.
        def dk_n(x):
            d = x.shape[-1]
            return jnp.transpose(x, (2, 1, 0)).reshape(d * K, N)

        lp_t, up_t, ut_t, t2d_t = dk_n(lp), dk_n(up), dk_n(ut), dk_n(t2d)
        intr_t = jnp.transpose(intr, (1, 0))                         # (4|9, N)
        if intr_t.shape[0] == 4:
            # zero distortion reproduces the pinhole-only branch exactly
            intr_t = jnp.concatenate(
                [intr_t, jnp.zeros((5, N), jnp.float32)], axis=0)

        # Tile over N (lane dim).  Tile must be a multiple of 128; pad N up to a
        # multiple of the tile and mask padded columns inside the kernel.
        tile_n = min(self.tile_n, _round_up(N, 128))
        n_pad = _round_up(N, tile_n)
        if n_pad != N:
            pad = n_pad - N
            pad2 = lambda a: jnp.pad(a, ((0, 0), (0, pad)))
            lp_t, up_t, ut_t = pad2(lp_t), pad2(up_t), pad2(ut_t)
            t2d_t, intr_t = pad2(t2d_t), pad2(intr_t)

        grid = (n_pad // tile_n,)

        kernel = functools.partial(
            _semi_sup_kernel, K=K, parents=self.joint_parents, n_valid=N,
            num_non_root=self.num_non_root,
            proj_w=self.projection_loss_weight, bone_w=self.bone_loss_weight)

        def spec(rows):
            return pl.BlockSpec((rows, tile_n), lambda i: (0, i))

        bytes_accessed = int((3 * 3 * K + 2 * K + 9) * 4 * n_pad + 8)
        cost = pl.CostEstimate(flops=int(45 * n_pad * K),
                               transcendentals=int(4 * n_pad * K),
                               bytes_accessed=bytes_accessed)

        out = pl.pallas_call(
            kernel,
            out_shape=jax.ShapeDtypeStruct((1, 2), jnp.float32),
            grid=grid,
            in_specs=[spec(3 * K), spec(3 * K), spec(3 * K),
                      spec(2 * K), spec(9)],
            out_specs=pl.BlockSpec((1, 2), lambda i: (0, 0)),
            scratch_shapes=[pltpu.VMEM((K, tile_n), jnp.float32),
                            pltpu.VMEM((K, tile_n), jnp.float32),
                            pltpu.VMEM((K, tile_n), jnp.float32)],
            compiler_params=pltpu.CompilerParams(
                dimension_semantics=("arbitrary",),
                vmem_limit_bytes=32 * 1024 * 1024),
            cost_estimate=cost,
        )(lp_t, up_t, ut_t, t2d_t, intr_t)

        losses['proj_loss'] = out[0, 0]
        losses['bone_loss'] = out[0, 1]
        return losses


def _reference(lp, up, ut, t2d, intr, parents):
    """Pure-JAX reference mirroring the PyTorch code (for verification)."""
    x = up + ut
    f = intr[:, None, 0:2]
    c = intr[:, None, 2:4]
    k = intr[:, None, 4:7]
    p = intr[:, None, 7:9]
    _x = jnp.clip(x[:, :, :2] / x[:, :, 2:], -1.0, 1.0)
    r2 = jnp.sum(_x ** 2, axis=-1, keepdims=True)
    radial = 1 + jnp.sum(k * jnp.concatenate([r2, r2 ** 2, r2 ** 3], axis=-1),
                         axis=-1, keepdims=True)
    tan = jnp.sum(p * _x, axis=-1, keepdims=True)
    _x = _x * (radial + tan) + p * r2
    proj = f * _x + c
    proj_loss = jnp.mean(jnp.linalg.norm(proj - t2d, axis=-1))

    parents_arr = jnp.asarray(parents)
    non_root = [i for i, pi in enumerate(parents) if pi != i]
    ob = jnp.linalg.norm(up - up[:, parents_arr, :], axis=-1)[:, non_root]
    tb = jnp.linalg.norm(lp - lp[:, parents_arr, :], axis=-1)[:, non_root]
    bone_loss = jnp.mean(jnp.abs(ob.mean(axis=0) - tb.mean(axis=0)))
    return proj_loss, bone_loss


if __name__ == "__main__":
    joint_parents = [0, 0, 1, 2, 0, 4, 5, 6]   # joint 0 is the root
    K = len(joint_parents)

    def make_inputs(key, N):
        k1, k2, k3, k4, k5 = jax.random.split(key, 5)
        labeled_pose = jax.random.normal(k1, (N, K, 3), jnp.float32)
        unlabeled_pose = jax.random.normal(k2, (N, K, 3), jnp.float32)
        # keep the projection depth (z) safely positive
        unlabeled_traj = jax.random.normal(k3, (N, K, 3), jnp.float32) * 0.1 \
            + jnp.asarray([0.0, 0.0, 4.0], jnp.float32)
        unlabeled_target_2d = jax.random.normal(k4, (N, K, 2), jnp.float32)
        ivals = jax.random.uniform(k5, (N, 9), jnp.float32, 0.0, 0.1)
        intrinsics = ivals.at[:, 0:2].add(1.0)   # focal lengths ~1.0-1.1
        output = {'labeled_pose': labeled_pose,
                  'unlabeled_pose': unlabeled_pose,
                  'unlabeled_traj': unlabeled_traj}
        target = {'unlabeled_target_2d': unlabeled_target_2d,
                  'intrinsics': intrinsics}
        return output, target

    key = jax.random.PRNGKey(0)
    ka, kb = jax.random.split(key)

    # --- case 1: tiny batch, single grid step -----------------------------
    out1, tgt1 = make_inputs(ka, 2)
    loss_mod = SemiSupervisionLossPallas(joint_parents,
                                         projection_loss_weight=1.0,
                                         bone_loss_weight=1.0,
                                         warmup_iterations=0)
    losses = loss_mod(out1, tgt1)
    proj = jax.block_until_ready(losses['proj_loss'])
    bone = jax.block_until_ready(losses['bone_loss'])
    rp, rb = _reference(out1['labeled_pose'], out1['unlabeled_pose'],
                        out1['unlabeled_traj'], tgt1['unlabeled_target_2d'],
                        tgt1['intrinsics'], joint_parents)
    assert np.allclose(np.asarray(proj), np.asarray(rp), rtol=1e-5, atol=1e-5)
    assert np.allclose(np.asarray(bone), np.asarray(rb), rtol=1e-5, atol=1e-5)

    # --- case 2: multi-tile grid with column masking (N not tile-aligned) --
    out2, tgt2 = make_inputs(kb, 300)
    loss_mod2 = SemiSupervisionLossPallas(joint_parents,
                                          projection_loss_weight=0.7,
                                          bone_loss_weight=1.3,
                                          warmup_iterations=0,
                                          tile_n=128)
    losses2 = loss_mod2(out2, tgt2)
    proj2 = jax.block_until_ready(losses2['proj_loss'])
    bone2 = jax.block_until_ready(losses2['bone_loss'])
    rp2, rb2 = _reference(out2['labeled_pose'], out2['unlabeled_pose'],
                          out2['unlabeled_traj'], tgt2['unlabeled_target_2d'],
                          tgt2['intrinsics'], joint_parents)
    assert np.allclose(np.asarray(proj2), 0.7 * np.asarray(rp2),
                       rtol=1e-5, atol=1e-5)
    assert np.allclose(np.asarray(bone2), 1.3 * np.asarray(rb2),
                       rtol=1e-5, atol=1e-5)

    print("KERNEL_OK")
</pallas_src>

<mosaic_0001>
module attributes {stable_mosaic.version = 11 : i64} {
  func.func @_semi_sup_kernel(%arg0: i32, %arg1: memref<24x128xf32, #tpu.memory_space<vmem>>, %arg2: memref<24x128xf32, #tpu.memory_space<vmem>>, %arg3: memref<24x128xf32, #tpu.memory_space<vmem>>, %arg4: memref<16x128xf32, #tpu.memory_space<vmem>>, %arg5: memref<9x128xf32, #tpu.memory_space<vmem>>, %arg6: memref<1x2xf32, #tpu.memory_space<vmem>>, %arg7: memref<8x128xf32, #tpu.memory_space<vmem>>, %arg8: memref<8x128xf32, #tpu.memory_space<vmem>>, %arg9: memref<8x128xf32, #tpu.memory_space<vmem>>) attributes {dimension_semantics = [#tpu.dimension_semantics<arbitrary>], iteration_bounds = array<i64: 1>, scalar_prefetch = 0 : i64, scratch_operands = 3 : i64, tpu.core_type = #tpu.core_type<tc>, window_params = [{transform_indices = @transform_0, window_bounds = array<i64: 24, 128>}, {transform_indices = @transform_1, window_bounds = array<i64: 24, 128>}, {transform_indices = @transform_2, window_bounds = array<i64: 24, 128>}, {transform_indices = @transform_3, window_bounds = array<i64: 16, 128>}, {transform_indices = @transform_4, window_bounds = array<i64: 9, 128>}, {pipeline_mode = #tpu.pipeline_mode<synchronous>, transform_indices = @transform_5, window_bounds = array<i64: 1, 2>}]} {
    %c0_i32 = arith.constant 0 : i32
    %0 = arith.cmpi eq, %arg0, %c0_i32 : i32
    %1 = arith.extui %0 : i1 to i32
    %c0_i32_0 = arith.constant 0 : i32
    %2 = arith.cmpi ne, %1, %c0_i32_0 : i32
    scf.if %2 {
      %cst_32 = arith.constant 0.000000e+00 : f32
      %180 = vector.broadcast %cst_32 : f32 to vector<8x128xf32>
      %c0_33 = arith.constant 0 : index
      %c0_34 = arith.constant 0 : index
      %181 = vector.load %arg7[%c0_33, %c0_34] : memref<8x128xf32, #tpu.memory_space<vmem>>, vector<8x128xf32>
      tpu.vector_store %arg7[%c0_33, %c0_34], %180 {strides = array<i32>} : memref<8x128xf32, #tpu.memory_space<vmem>>, vector<8x128xf32>,
      %cst_35 = arith.constant 0.000000e+00 : f32
      %182 = vector.broadcast %cst_35 : f32 to vector<8x128xf32>
      %c0_36 = arith.constant 0 : index
      %c0_37 = arith.constant 0 : index
      %183 = vector.load %arg8[%c0_36, %c0_37] : memref<8x128xf32, #tpu.memory_space<vmem>>, vector<8x128xf32>
      tpu.vector_store %arg8[%c0_36, %c0_37], %182 {strides = array<i32>} : memref<8x128xf32, #tpu.memory_space<vmem>>, vector<8x128xf32>,
      %cst_38 = arith.constant 0.000000e+00 : f32
      %184 = vector.broadcast %cst_38 : f32 to vector<8x128xf32>
      %c0_39 = arith.constant 0 : index
      %c0_40 = arith.constant 0 : index
      %185 = vector.load %arg9[%c0_39, %c0_40] : memref<8x128xf32, #tpu.memory_space<vmem>>, vector<8x128xf32>
      tpu.vector_store %arg9[%c0_39, %c0_40], %184 {strides = array<i32>} : memref<8x128xf32, #tpu.memory_space<vmem>>, vector<8x128xf32>,
    } else {
    }
    %c0 = arith.constant 0 : index
    %c0_1 = arith.constant 0 : index
    %3 = vector.load %arg1[%c0, %c0_1] : memref<24x128xf32, #tpu.memory_space<vmem>>, vector<24x128xf32>
    %c0_2 = arith.constant 0 : index
    %c0_3 = arith.constant 0 : index
    %4 = vector.load %arg2[%c0_2, %c0_3] : memref<24x128xf32, #tpu.memory_space<vmem>>, vector<24x128xf32>
    %c0_4 = arith.constant 0 : index
    %c0_5 = arith.constant 0 : index
    %5 = vector.load %arg3[%c0_4, %c0_5] : memref<24x128xf32, #tpu.memory_space<vmem>>, vector<24x128xf32>
    %c0_6 = arith.constant 0 : index
    %c0_7 = arith.constant 0 : index
    %6 = vector.load %arg4[%c0_6, %c0_7] : memref<16x128xf32, #tpu.memory_space<vmem>>, vector<16x128xf32>
    %c0_8 = arith.constant 0 : index
    %c0_9 = arith.constant 0 : index
    %7 = vector.load %arg5[%c0_8, %c0_9] : memref<9x128xf32, #tpu.memory_space<vmem>>, vector<9x128xf32>
    %8 = tpu.iota {dimensions = array<i32: 1>} : vector<8x128xi32>
    %c128_i32 = arith.constant 128 : i32
    %9 = arith.muli %arg0, %c128_i32 : i32
    %10 = vector.broadcast %9 : i32 to vector<8x128xi32>
    %11 = arith.addi %8, %10 : vector<8x128xi32>
    %c2_i32 = arith.constant 2 : i32
    %12 = vector.broadcast %c2_i32 : i32 to vector<8x128xi32>
    %13 = arith.cmpi slt, %11, %12 : vector<8x128xi32>
    %14 = arith.addf %4, %5 : vector<24x128xf32>
    %15 = vector.extract_strided_slice %14 {offsets = [0, 0], sizes = [8, 128], strides = [1, 1]} : vector<24x128xf32> to vector<8x128xf32>
    %16 = vector.extract_strided_slice %14 {offsets = [8, 0], sizes = [8, 128], strides = [1, 1]} : vector<24x128xf32> to vector<8x128xf32>
    %17 = vector.extract_strided_slice %14 {offsets = [16, 0], sizes = [8, 128], strides = [1, 1]} : vector<24x128xf32> to vector<8x128xf32>
    %cst = arith.constant 1.000000e+00 : f32
    %18 = vector.broadcast %cst : f32 to vector<8x128xf32>
    %19 = arith.divf %18, %17 : vector<8x128xf32>
    %20 = arith.mulf %15, %19 : vector<8x128xf32>
    %cst_10 = arith.constant -1.000000e+00 : f32
    %cst_11 = arith.constant 1.000000e+00 : f32
    %21 = vector.broadcast %cst_10 : f32 to vector<8x128xf32>
    %22 = arith.maximumf %21, %20 : vector<8x128xf32>
    %23 = vector.broadcast %cst_11 : f32 to vector<8x128xf32>
    %24 = arith.minimumf %23, %22 : vector<8x128xf32>
    %25 = arith.mulf %16, %19 : vector<8x128xf32>
    %cst_12 = arith.constant -1.000000e+00 : f32
    %cst_13 = arith.constant 1.000000e+00 : f32
    %26 = vector.broadcast %cst_12 : f32 to vector<8x128xf32>
    %27 = arith.maximumf %26, %25 : vector<8x128xf32>
    %28 = vector.broadcast %cst_13 : f32 to vector<8x128xf32>
    %29 = arith.minimumf %28, %27 : vector<8x128xf32>
    %30 = vector.extract_strided_slice %7 {offsets = [0, 0], sizes = [1, 128], strides = [1, 1]} : vector<9x128xf32> to vector<1x128xf32>
    %31 = vector.extract_strided_slice %7 {offsets = [1, 0], sizes = [1, 128], strides = [1, 1]} : vector<9x128xf32> to vector<1x128xf32>
    %32 = vector.extract_strided_slice %7 {offsets = [2, 0], sizes = [1, 128], strides = [1, 1]} : vector<9x128xf32> to vector<1x128xf32>
    %33 = vector.extract_strided_slice %7 {offsets = [3, 0], sizes = [1, 128], strides = [1, 1]} : vector<9x128xf32> to vector<1x128xf32>
    %34 = vector.extract_strided_slice %7 {offsets = [4, 0], sizes = [1, 128], strides = [1, 1]} : vector<9x128xf32> to vector<1x128xf32>
    %35 = vector.extract_strided_slice %7 {offsets = [5, 0], sizes = [1, 128], strides = [1, 1]} : vector<9x128xf32> to vector<1x128xf32>
    %36 = vector.extract_strided_slice %7 {offsets = [6, 0], sizes = [1, 128], strides = [1, 1]} : vector<9x128xf32> to vector<1x128xf32>
    %37 = vector.extract_strided_slice %7 {offsets = [7, 0], sizes = [1, 128], strides = [1, 1]} : vector<9x128xf32> to vector<1x128xf32>
    %38 = vector.extract_strided_slice %7 {offsets = [8, 0], sizes = [1, 128], strides = [1, 1]} : vector<9x128xf32> to vector<1x128xf32>
    %39 = arith.mulf %24, %24 : vector<8x128xf32>
    %40 = arith.mulf %29, %29 : vector<8x128xf32>
    %41 = arith.addf %39, %40 : vector<8x128xf32>
    %42 = arith.mulf %41, %41 : vector<8x128xf32>
    %43 = arith.mulf %42, %41 : vector<8x128xf32>
    %44 = vector.broadcast %34 : vector<1x128xf32> to vector<8x128xf32>
    %45 = arith.mulf %44, %41 : vector<8x128xf32>
    %cst_14 = arith.constant 1.000000e+00 : f32
    %46 = vector.broadcast %cst_14 : f32 to vector<8x128xf32>
    %47 = arith.addf %46, %45 : vector<8x128xf32>
    %48 = vector.broadcast %35 : vector<1x128xf32> to vector<8x128xf32>
    %49 = arith.mulf %48, %42 : vector<8x128xf32>
    %50 = arith.addf %47, %49 : vector<8x128xf32>
    %51 = vector.broadcast %36 : vector<1x128xf32> to vector<8x128xf32>
    %52 = arith.mulf %51, %43 : vector<8x128xf32>
    %53 = arith.addf %50, %52 : vector<8x128xf32>
    %54 = vector.broadcast %37 : vector<1x128xf32> to vector<8x128xf32>
    %55 = arith.mulf %54, %24 : vector<8x128xf32>
    %56 = vector.broadcast %38 : vector<1x128xf32> to vector<8x128xf32>
    %57 = arith.mulf %56, %29 : vector<8x128xf32>
    %58 = arith.addf %55, %57 : vector<8x128xf32>
    %59 = arith.addf %53, %58 : vector<8x128xf32>
    %60 = arith.mulf %24, %59 : vector<8x128xf32>
    %61 = vector.broadcast %37 : vector<1x128xf32> to vector<8x128xf32>
    %62 = arith.mulf %61, %41 : vector<8x128xf32>
    %63 = arith.addf %60, %62 : vector<8x128xf32>
    %64 = vector.broadcast %30 : vector<1x128xf32> to vector<8x128xf32>
    %65 = arith.mulf %64, %63 : vector<8x128xf32>
    %66 = vector.broadcast %32 : vector<1x128xf32> to vector<8x128xf32>
    %67 = arith.addf %65, %66 : vector<8x128xf32>
    %68 = arith.mulf %29, %59 : vector<8x128xf32>
    %69 = vector.broadcast %38 : vector<1x128xf32> to vector<8x128xf32>
    %70 = arith.mulf %69, %41 : vector<8x128xf32>
    %71 = arith.addf %68, %70 : vector<8x128xf32>
    %72 = vector.broadcast %31 : vector<1x128xf32> to vector<8x128xf32>
    %73 = arith.mulf %72, %71 : vector<8x128xf32>
    %74 = vector.broadcast %33 : vector<1x128xf32> to vector<8x128xf32>
    %75 = arith.addf %73, %74 : vector<8x128xf32>
    %76 = vector.extract_strided_slice %6 {offsets = [0, 0], sizes = [8, 128], strides = [1, 1]} : vector<16x128xf32> to vector<8x128xf32>
    %77 = arith.subf %67, %76 : vector<8x128xf32>
    %78 = vector.extract_strided_slice %6 {offsets = [8, 0], sizes = [8, 128], strides = [1, 1]} : vector<16x128xf32> to vector<8x128xf32>
    %79 = arith.subf %75, %78 : vector<8x128xf32>
    %80 = arith.mulf %77, %77 : vector<8x128xf32>
    %81 = arith.mulf %79, %79 : vector<8x128xf32>
    %82 = arith.addf %80, %81 : vector<8x128xf32>
    %83 = math.sqrt %82 : vector<8x128xf32>
    %c0_15 = arith.constant 0 : index
    %c0_16 = arith.constant 0 : index
    %84 = vector.load %arg7[%c0_15, %c0_16] : memref<8x128xf32, #tpu.memory_space<vmem>>, vector<8x128xf32>
    %cst_17 = arith.constant 0.000000e+00 : f32
    %85 = vector.broadcast %cst_17 : f32 to vector<8x128xf32>
    %86 = arith.select %13, %83, %85 : vector<8x128xi1>, vector<8x128xf32>
    %87 = arith.addf %84, %86 : vector<8x128xf32>
    %c0_18 = arith.constant 0 : index
    %c0_19 = arith.constant 0 : index
    %88 = vector.load %arg7[%c0_18, %c0_19] : memref<8x128xf32, #tpu.memory_space<vmem>>, vector<8x128xf32>
    tpu.vector_store %arg7[%c0_18, %c0_19], %87 {strides = array<i32>} : memref<8x128xf32, #tpu.memory_space<vmem>>, vector<8x128xf32>,
    %89 = vector.extract_strided_slice %4 {offsets = [0, 0], sizes = [8, 128], strides = [1, 1]} : vector<24x128xf32> to vector<8x128xf32>
    %90 = vector.extract_strided_slice %89 {offsets = [0, 0], sizes = [1, 128], strides = [1, 1]} : vector<8x128xf32> to vector<1x128xf32>
    %91 = vector.extract_strided_slice %89 {offsets = [0, 0], sizes = [1, 128], strides = [1, 1]} : vector<8x128xf32> to vector<1x128xf32>
    %92 = vector.extract_strided_slice %89 {offsets = [1, 0], sizes = [1, 128], strides = [1, 1]} : vector<8x128xf32> to vector<1x128xf32>
    %93 = vector.extract_strided_slice %89 {offsets = [2, 0], sizes = [1, 128], strides = [1, 1]} : vector<8x128xf32> to vector<1x128xf32>
    %94 = vector.extract_strided_slice %89 {offsets = [0, 0], sizes = [1, 128], strides = [1, 1]} : vector<8x128xf32> to vector<1x128xf32>
    %95 = vector.extract_strided_slice %89 {offsets = [4, 0], sizes = [1, 128], strides = [1, 1]} : vector<8x128xf32> to vector<1x128xf32>
    %96 = vector.extract_strided_slice %89 {offsets = [5, 0], sizes = [1, 128], strides = [1, 1]} : vector<8x128xf32> to vector<1x128xf32>
    %97 = vector.extract_strided_slice %89 {offsets = [6, 0], sizes = [1, 128], strides = [1, 1]} : vector<8x128xf32> to vector<1x128xf32>
    %98 = tpu.concatenate %90, %91, %92, %93, %94, %95, %96, %97 in 0 : vector<1x128xf32>, vector<1x128xf32>, vector<1x128xf32>, vector<1x128xf32>, vector<1x128xf32>, vector<1x128xf32>, vector<1x128xf32>, vector<1x128xf32> -> vector<8x128xf32>
    %99 = arith.subf %89, %98 : vector<8x128xf32>
    %100 = arith.mulf %99, %99 : vector<8x128xf32>
    %101 = vector.extract_strided_slice %4 {offsets = [8, 0], sizes = [8, 128], strides = [1, 1]} : vector<24x128xf32> to vector<8x128xf32>
    %102 = vector.extract_strided_slice %101 {offsets = [0, 0], sizes = [1, 128], strides = [1, 1]} : vector<8x128xf32> to vector<1x128xf32>
    %103 = vector.extract_strided_slice %101 {offsets = [0, 0], sizes = [1, 128], strides = [1, 1]} : vector<8x128xf32> to vector<1x128xf32>
    %104 = vector.extract_strided_slice %101 {offsets = [1, 0], sizes = [1, 128], strides = [1, 1]} : vector<8x128xf32> to vector<1x128xf32>
    %105 = vector.extract_strided_slice %101 {offsets = [2, 0], sizes = [1, 128], strides = [1, 1]} : vector<8x128xf32> to vector<1x128xf32>
    %106 = vector.extract_strided_slice %101 {offsets = [0, 0], sizes = [1, 128], strides = [1, 1]} : vector<8x128xf32> to vector<1x128xf32>
    %107 = vector.extract_strided_slice %101 {offsets = [4, 0], sizes = [1, 128], strides = [1, 1]} : vector<8x128xf32> to vector<1x128xf32>
    %108 = vector.extract_strided_slice %101 {offsets = [5, 0], sizes = [1, 128], strides = [1, 1]} : vector<8x128xf32> to vector<1x128xf32>
    %109 = vector.extract_strided_slice %101 {offsets = [6, 0], sizes = [1, 128], strides = [1, 1]} : vector<8x128xf32> to vector<1x128xf32>
    %110 = tpu.concatenate %102, %103, %104, %105, %106, %107, %108, %109 in 0 : vector<1x128xf32>, vector<1x128xf32>, vector<1x128xf32>, vector<1x128xf32>, vector<1x128xf32>, vector<1x128xf32>, vector<1x128xf32>, vector<1x128xf32> -> vector<8x128xf32>
    %111 = arith.subf %101, %110 : vector<8x128xf32>
    %112 = arith.mulf %111, %111 : vector<8x128xf32>
    %113 = arith.addf %100, %112 : vector<8x128xf32>
    %114 = vector.extract_strided_slice %4 {offsets = [16, 0], sizes = [8, 128], strides = [1, 1]} : vector<24x128xf32> to vector<8x128xf32>
    %115 = vector.extract_strided_slice %114 {offsets = [0, 0], sizes = [1, 128], strides = [1, 1]} : vector<8x128xf32> to vector<1x128xf32>
    %116 = vector.extract_strided_slice %114 {offsets = [0, 0], sizes = [1, 128], strides = [1, 1]} : vector<8x128xf32> to vector<1x128xf32>
    %117 = vector.extract_strided_slice %114 {offsets = [1, 0], sizes = [1, 128], strides = [1, 1]} : vector<8x128xf32> to vector<1x128xf32>
    %118 = vector.extract_strided_slice %114 {offsets = [2, 0], sizes = [1, 128], strides = [1, 1]} : vector<8x128xf32> to vector<1x128xf32>
    %119 = vector.extract_strided_slice %114 {offsets = [0, 0], sizes = [1, 128], strides = [1, 1]} : vector<8x128xf32> to vector<1x128xf32>
    %120 = vector.extract_strided_slice %114 {offsets = [4, 0], sizes = [1, 128], strides = [1, 1]} : vector<8x128xf32> to vector<1x128xf32>
    %121 = vector.extract_strided_slice %114 {offsets = [5, 0], sizes = [1, 128], strides = [1, 1]} : vector<8x128xf32> to vector<1x128xf32>
    %122 = vector.extract_strided_slice %114 {offsets = [6, 0], sizes = [1, 128], strides = [1, 1]} : vector<8x128xf32> to vector<1x128xf32>
    %123 = tpu.concatenate %115, %116, %117, %118, %119, %120, %121, %122 in 0 : vector<1x128xf32>, vector<1x128xf32>, vector<1x128xf32>, vector<1x128xf32>, vector<1x128xf32>, vector<1x128xf32>, vector<1x128xf32>, vector<1x128xf32> -> vector<8x128xf32>
    %124 = arith.subf %114, %123 : vector<8x128xf32>
    %125 = arith.mulf %124, %124 : vector<8x128xf32>
    %126 = arith.addf %113, %125 : vector<8x128xf32>
    %127 = math.sqrt %126 : vector<8x128xf32>
    %128 = vector.extract_strided_slice %3 {offsets = [0, 0], sizes = [8, 128], strides = [1, 1]} : vector<24x128xf32> to vector<8x128xf32>
    %129 = vector.extract_strided_slice %128 {offsets = [0, 0], sizes = [1, 128], strides = [1, 1]} : vector<8x128xf32> to vector<1x128xf32>
    %130 = vector.extract_strided_slice %128 {offsets = [0, 0], sizes = [1, 128], strides = [1, 1]} : vector<8x128xf32> to vector<1x128xf32>
    %131 = vector.extract_strided_slice %128 {offsets = [1, 0], sizes = [1, 128], strides = [1, 1]} : vector<8x128xf32> to vector<1x128xf32>
    %132 = vector.extract_strided_slice %128 {offsets = [2, 0], sizes = [1, 128], strides = [1, 1]} : vector<8x128xf32> to vector<1x128xf32>
    %133 = vector.extract_strided_slice %128 {offsets = [0, 0], sizes = [1, 128], strides = [1, 1]} : vector<8x128xf32> to vector<1x128xf32>
    %134 = vector.extract_strided_slice %128 {offsets = [4, 0], sizes = [1, 128], strides = [1, 1]} : vector<8x128xf32> to vector<1x128xf32>
    %135 = vector.extract_strided_slice %128 {offsets = [5, 0], sizes = [1, 128], strides = [1, 1]} : vector<8x128xf32> to vector<1x128xf32>
    %136 = vector.extract_strided_slice %128 {offsets = [6, 0], sizes = [1, 128], strides = [1, 1]} : vector<8x128xf32> to vector<1x128xf32>
    %137 = tpu.concatenate %129, %130, %131, %132, %133, %134, %135, %136 in 0 : vector<1x128xf32>, vector<1x128xf32>, vector<1x128xf32>, vector<1x128xf32>, vector<1x128xf32>, vector<1x128xf32>, vector<1x128xf32>, vector<1x128xf32> -> vector<8x128xf32>
    %138 = arith.subf %128, %137 : vector<8x128xf32>
    %139 = arith.mulf %138, %138 : vector<8x128xf32>
    %140 = vector.extract_strided_slice %3 {offsets = [8, 0], sizes = [8, 128], strides = [1, 1]} : vector<24x128xf32> to vector<8x128xf32>
    %141 = vector.extract_strided_slice %140 {offsets = [0, 0], sizes = [1, 128], strides = [1, 1]} : vector<8x128xf32> to vector<1x128xf32>
    %142 = vector.extract_strided_slice %140 {offsets = [0, 0], sizes = [1, 128], strides = [1, 1]} : vector<8x128xf32> to vector<1x128xf32>
    %143 = vector.extract_strided_slice %140 {offsets = [1, 0], sizes = [1, 128], strides = [1, 1]} : vector<8x128xf32> to vector<1x128xf32>
    %144 = vector.extract_strided_slice %140 {offsets = [2, 0], sizes = [1, 128], strides = [1, 1]} : vector<8x128xf32> to vector<1x128xf32>
    %145 = vector.extract_strided_slice %140 {offsets = [0, 0], sizes = [1, 128], strides = [1, 1]} : vector<8x128xf32> to vector<1x128xf32>
    %146 = vector.extract_strided_slice %140 {offsets = [4, 0], sizes = [1, 128], strides = [1, 1]} : vector<8x128xf32> to vector<1x128xf32>
    %147 = vector.extract_strided_slice %140 {offsets = [5, 0], sizes = [1, 128], strides = [1, 1]} : vector<8x128xf32> to vector<1x128xf32>
    %148 = vector.extract_strided_slice %140 {offsets = [6, 0], sizes = [1, 128], strides = [1, 1]} : vector<8x128xf32> to vector<1x128xf32>
    %149 = tpu.concatenate %141, %142, %143, %144, %145, %146, %147, %148 in 0 : vector<1x128xf32>, vector<1x128xf32>, vector<1x128xf32>, vector<1x128xf32>, vector<1x128xf32>, vector<1x128xf32>, vector<1x128xf32>, vector<1x128xf32> -> vector<8x128xf32>
    %150 = arith.subf %140, %149 : vector<8x128xf32>
    %151 = arith.mulf %150, %150 : vector<8x128xf32>
    %152 = arith.addf %139, %151 : vector<8x128xf32>
    %153 = vector.extract_strided_slice %3 {offsets = [16, 0], sizes = [8, 128], strides = [1, 1]} : vector<24x128xf32> to vector<8x128xf32>
    %154 = vector.extract_strided_slice %153 {offsets = [0, 0], sizes = [1, 128], strides = [1, 1]} : vector<8x128xf32> to vector<1x128xf32>
    %155 = vector.extract_strided_slice %153 {offsets = [0, 0], sizes = [1, 128], strides = [1, 1]} : vector<8x128xf32> to vector<1x128xf32>
    %156 = vector.extract_strided_slice %153 {offsets = [1, 0], sizes = [1, 128], strides = [1, 1]} : vector<8x128xf32> to vector<1x128xf32>
    %157 = vector.extract_strided_slice %153 {offsets = [2, 0], sizes = [1, 128], strides = [1, 1]} : vector<8x128xf32> to vector<1x128xf32>
    %158 = vector.extract_strided_slice %153 {offsets = [0, 0], sizes = [1, 128], strides = [1, 1]} : vector<8x128xf32> to vector<1x128xf32>
    %159 = vector.extract_strided_slice %153 {offsets = [4, 0], sizes = [1, 128], strides = [1, 1]} : vector<8x128xf32> to vector<1x128xf32>
    %160 = vector.extract_strided_slice %153 {offsets = [5, 0], sizes = [1, 128], strides = [1, 1]} : vector<8x128xf32> to vector<1x128xf32>
    %161 = vector.extract_strided_slice %153 {offsets = [6, 0], sizes = [1, 128], strides = [1, 1]} : vector<8x128xf32> to vector<1x128xf32>
    %162 = tpu.concatenate %154, %155, %156, %157, %158, %159, %160, %161 in 0 : vector<1x128xf32>, vector<1x128xf32>, vector<1x128xf32>, vector<1x128xf32>, vector<1x128xf32>, vector<1x128xf32>, vector<1x128xf32>, vector<1x128xf32> -> vector<8x128xf32>
    %163 = arith.subf %153, %162 : vector<8x128xf32>
    %164 = arith.mulf %163, %163 : vector<8x128xf32>
    %165 = arith.addf %152, %164 : vector<8x128xf32>
    %166 = math.sqrt %165 : vector<8x128xf32>
    %c0_20 = arith.constant 0 : index
    %c0_21 = arith.constant 0 : index
    %167 = vector.load %arg8[%c0_20, %c0_21] : memref<8x128xf32, #tpu.memory_space<vmem>>, vector<8x128xf32>
    %cst_22 = arith.constant 0.000000e+00 : f32
    %168 = vector.broadcast %cst_22 : f32 to vector<8x128xf32>
    %169 = arith.select %13, %127, %168 : vector<8x128xi1>, vector<8x128xf32>
    %170 = arith.addf %167, %169 : vector<8x128xf32>
    %c0_23 = arith.constant 0 : index
    %c0_24 = arith.constant 0 : index
    %171 = vector.load %arg8[%c0_23, %c0_24] : memref<8x128xf32, #tpu.memory_space<vmem>>, vector<8x128xf32>
    tpu.vector_store %arg8[%c0_23, %c0_24], %170 {strides = array<i32>} : memref<8x128xf32, #tpu.memory_space<vmem>>, vector<8x128xf32>,
    %c0_25 = arith.constant 0 : index
    %c0_26 = arith.constant 0 : index
    %172 = vector.load %arg9[%c0_25, %c0_26] : memref<8x128xf32, #tpu.memory_space<vmem>>, vector<8x128xf32>
    %cst_27 = arith.constant 0.000000e+00 : f32
    %173 = vector.broadcast %cst_27 : f32 to vector<8x128xf32>
    %174 = arith.select %13, %166, %173 : vector<8x128xi1>, vector<8x128xf32>
    %175 = arith.addf %172, %174 : vector<8x128xf32>
    %c0_28 = arith.constant 0 : index
    %c0_29 = arith.constant 0 : index
    %176 = vector.load %arg9[%c0_28, %c0_29] : memref<8x128xf32, #tpu.memory_space<vmem>>, vector<8x128xf32>
    tpu.vector_store %arg9[%c0_28, %c0_29], %175 {strides = array<i32>} : memref<8x128xf32, #tpu.memory_space<vmem>>, vector<8x128xf32>,
    %c0_i32_30 = arith.constant 0 : i32
    %177 = arith.cmpi eq, %arg0, %c0_i32_30 : i32
    %178 = arith.extui %177 : i1 to i32
    %c0_i32_31 = arith.constant 0 : i32
    %179 = arith.cmpi ne, %178, %c0_i32_31 : i32
    scf.if %179 {
      %c0_32 = arith.constant 0 : index
      %c0_33 = arith.constant 0 : index
      %180 = vector.load %arg7[%c0_32, %c0_33] : memref<8x128xf32, #tpu.memory_space<vmem>>, vector<8x128xf32>
      %181 = vector.shape_cast %180 : vector<8x128xf32> to vector<1x8x128xf32>
      %cst_34 = arith.constant dense<0.000000e+00> : vector<1xf32>
      %182 = vector.multi_reduction <add>, %181, %cst_34 [1, 2] : vector<1x8x128xf32> to vector<1xf32>
      %183 = vector.shape_cast %182 : vector<1xf32> to vector<1x1x1xf32>
      %184 = vector.extract %183[0, 0, 0] : f32 from vector<1x1x1xf32>
      %cst_35 = arith.constant 1.600000e+01 : f32
      %185 = arith.divf %184, %cst_35 : f32
      %cst_36 = arith.constant 1.000000e+00 : f32
      %186 = arith.mulf %185, %cst_36 : f32
      %c0_37 = arith.constant 0 : index
      %c0_38 = arith.constant 0 : index
      %187 = vector.load %arg8[%c0_37, %c0_38] : memref<8x128xf32, #tpu.memory_space<vmem>>, vector<8x128xf32>
      %cst_39 = arith.constant dense<0.000000e+00> : vector<8xf32>
      %188 = vector.multi_reduction <add>, %187, %cst_39 [1] : vector<8x128xf32> to vector<8xf32>
      %189 = vector.shape_cast %188 : vector<8xf32> to vector<8x1xf32>
      %c0_40 = arith.constant 0 : index
      %c0_41 = arith.constant 0 : index
      %190 = vector.load %arg9[%c0_40, %c0_41] : memref<8x128xf32, #tpu.memory_space<vmem>>, vector<8x128xf32>
      %cst_42 = arith.constant dense<0.000000e+00> : vector<8xf32>
      %191 = vector.multi_reduction <add>, %190, %cst_42 [1] : vector<8x128xf32> to vector<8xf32>
      %192 = vector.shape_cast %191 : vector<8xf32> to vector<8x1xf32>
      %193 = arith.subf %189, %192 : vector<8x1xf32>
      %194 = math.absf %193 : vector<8x1xf32>
      %cst_43 = arith.constant 5.000000e-01 : f32
      %195 = vector.broadcast %cst_43 : f32 to vector<8x1xf32>
      %196 = arith.mulf %194, %195 : vector<8x1xf32>
      %197 = vector.shape_cast %196 : vector<8x1xf32> to vector<1x8x1xf32>
      %cst_44 = arith.constant dense<0.000000e+00> : vector<1xf32>
      %198 = vector.multi_reduction <add>, %197, %cst_44 [1, 2] : vector<1x8x1xf32> to vector<1xf32>
      %199 = vector.shape_cast %198 : vector<1xf32> to vector<1x1x1xf32>
      %200 = vector.extract %199[0, 0, 0] : f32 from vector<1x1x1xf32>
      %cst_45 = arith.constant 7.000000e+00 : f32
      %201 = arith.divf %200, %cst_45 : f32
      %cst_46 = arith.constant 1.000000e+00 : f32
      %202 = arith.mulf %201, %cst_46 : f32
      %203 = tpu.iota {dimensions = array<i32: 1>} : vector<1x2xi32>
      %c0_i32_47 = arith.constant 0 : i32
      %204 = vector.broadcast %c0_i32_47 : i32 to vector<1x2xi32>
      %205 = arith.cmpi eq, %203, %204 : vector<1x2xi32>
      %206 = vector.broadcast %186 : f32 to vector<1x2xf32>
      %207 = vector.broadcast %202 : f32 to vector<1x2xf32>
      %208 = arith.select %205, %206, %207 : vector<1x2xi1>, vector<1x2xf32>
      %c0_48 = arith.constant 0 : index
      %c0_49 = arith.constant 0 : index
      %209 = vector.load %arg6[%c0_48, %c0_49] : memref<1x2xf32, #tpu.memory_space<vmem>>, vector<1x2xf32>
      tpu.vector_store %arg6[%c0_48, %c0_49], %208 {strides = array<i32>} : memref<1x2xf32, #tpu.memory_space<vmem>>, vector<1x2xf32>,
    } else {
    }
    return
  }
  func.func @transform_0(%arg0: i32) -> (i32, i32) {
    %c0_i32 = arith.constant 0 : i32
    %c0_i32_0 = arith.constant 0 : i32
    return %c0_i32, %arg0 : i32, i32
  }
  func.func @transform_1(%arg0: i32) -> (i32, i32) {
    %c0_i32 = arith.constant 0 : i32
    %c0_i32_0 = arith.constant 0 : i32
    return %c0_i32, %arg0 : i32, i32
  }
  func.func @transform_2(%arg0: i32) -> (i32, i32) {
    %c0_i32 = arith.constant 0 : i32
    %c0_i32_0 = arith.constant 0 : i32
    return %c0_i32, %arg0 : i32, i32
  }
  func.func @transform_3(%arg0: i32) -> (i32, i32) {
    %c0_i32 = arith.constant 0 : i32
    %c0_i32_0 = arith.constant 0 : i32
    return %c0_i32, %arg0 : i32, i32
  }
  func.func @transform_4(%arg0: i32) -> (i32, i32) {
    %c0_i32 = arith.constant 0 : i32
    %c0_i32_0 = arith.constant 0 : i32
    return %c0_i32, %arg0 : i32, i32
  }
  func.func @transform_5(%arg0: i32) -> (i32, i32) {
    %c0_i32 = arith.constant 0 : i32
    %c0_i32_0 = arith.constant 0 : i32
    %c0_i32_1 = arith.constant 0 : i32
    return %c0_i32, %c0_i32_0 : i32, i32
  }
}

</mosaic_0001>

<llo_original>
// kernel: tpu_custom_call.1
$region0: #{tpu_custom_call.1}
  #allocation0 [shape = 'u32[]', space=smem, size = 0x4, offset = 0x4, fixed_abs, tag = 'smem constant byte address 0x4 - core index']
  #allocation1 [shape = 'u32[72,128]{1,0:T(1,128)}', space=vmem, size = 0x9000, scoped, tag = 'internal scratch']
  #allocation2 [shape = 'f32[8,128]{1,0:T(8,128)}', space=vmem, size = 0x1000, scoped, tag = 'scratch operand']
  #allocation3 [shape = 'f32[8,128]{1,0:T(8,128)}', space=vmem, size = 0x1000, scoped, tag = 'scratch operand']
  #allocation4 [shape = 'f32[8,128]{1,0:T(8,128)}', space=vmem, size = 0x1000, scoped, tag = 'scratch operand']
  %s0 = inlined_call_operand.hbm [shape: f32[24,128], index: 0, kind: input, shape index: {}]
  %s1 = inlined_call_operand.hbm [shape: f32[24,128], index: 1, kind: input, shape index: {}]
  %s2 = inlined_call_operand.hbm [shape: f32[24,128], index: 2, kind: input, shape index: {}]
  %s3 = inlined_call_operand.hbm [shape: f32[16,128], index: 3, kind: input, shape index: {}]
  %s4 = inlined_call_operand.hbm [shape: f32[9,128], index: 4, kind: input, shape index: {}]
  %s5 = inlined_call_operand.hbm [shape: f32[1,2], index: 5, kind: output, shape index: {}]
  %s6 = sld [smem:[#allocation0]]
  $region58: #{tpu_custom_call.1} parent=0
    _
  %s8 = ssub.s32 1, %s6
  %s9 = scalar_select 0, %s8, %s6
  $region1: #{tpu_custom_call.1} parent=0
    #allocation5 [shape = 'u8[12288]{0}', space=vmem, size = 0x3000, scoped, tag = 'input window, operand 0, single buffered']
    #allocation6 [shape = 's32[1]{0}', space=sflag, size = 0x4, scoped, tag = 'scoped memory for tpu_custom_call.1']
    #allocation7 [shape = 's32[1]{0}', space=sflag, size = 0x4, scoped, tag = 'scoped memory for tpu_custom_call.1']
    #allocation8 [shape = 'u8[12288]{0}', space=vmem, size = 0x3000, scoped, tag = 'input window, operand 1, single buffered']
    #allocation9 [shape = 's32[1]{0}', space=sflag, size = 0x4, scoped, tag = 'scoped memory for tpu_custom_call.1']
    #allocation10 [shape = 'u8[12288]{0}', space=vmem, size = 0x3000, scoped, tag = 'input window, operand 2, single buffered']
    #allocation11 [shape = 'u8[8192]{0}', space=vmem, size = 0x2000, scoped, tag = 'input window, operand 3, single buffered']
    #allocation12 [shape = 's32[1]{0}', space=sflag, size = 0x4, scoped, tag = 'scoped memory for tpu_custom_call.1']
    #allocation13 [shape = 'u8[8192]{0}', space=vmem, size = 0x2000, scoped, tag = 'input window, operand 4, single buffered']
    #allocation14 [shape = 'u8[512]{0}', space=vmem, size = 0x400, scoped, tag = 'output window, operand 0, single buffered']
    %10 = vsyncpa [#allocation6], 0
    %11 = vsyncpa [#allocation9], 0
    %12 = vsyncpa [#allocation12], 0
    %13 = vsyncpa [#allocation7], 0
    // Predicated region
    $region2: #{tpu_custom_call.1} parent=1 // pred_check
      _
    $region3: #{tpu_custom_call.1} parent=1 // pred_check_branch
      %15 = sbr.rel (0) target = $region5
    $region4: #{tpu_custom_call.1} parent=1 // pred_region
      %17 = vsyncadd [#allocation6], 0
      %s18 = sshll.u32 %s0, 4
      %s19 = int_to_ptr.hbm [resolvable:$true] %s18
      %s20 = sshll.u32 [#allocation5], 4
      %s21 = int_to_ptr.vmem [resolvable:$true] %s20
      %26 = dma.hbm_to_vmem [thread:$0]  %s19, 384, %s21, [#allocation6], 128, 128, 8
    $region5: #{tpu_custom_call.1} parent=1 // pred_fallthru
      _
    // Predicated region
    $region6: #{tpu_custom_call.1} parent=1 // pred_check
      _
    $region7: #{tpu_custom_call.1} parent=1 // pred_check_branch
      %28 = sbr.rel (0) target = $region9
    $region8: #{tpu_custom_call.1} parent=1 // pred_region
      %30 = vsyncadd [#allocation9], 0
      %s31 = sshll.u32 %s1, 4
      %s32 = int_to_ptr.hbm [resolvable:$true] %s31
      %s33 = sshll.u32 [#allocation8], 4
      %s34 = int_to_ptr.vmem [resolvable:$true] %s33
      %39 = dma.hbm_to_vmem [thread:$0]  %s32, 384, %s34, [#allocation9], 128, 128, 8
    $region9: #{tpu_custom_call.1} parent=1 // pred_fallthru
      _
    // Predicated region
    $region10: #{tpu_custom_call.1} parent=1 // pred_check
      _
    $region11: #{tpu_custom_call.1} parent=1 // pred_check_branch
      %41 = sbr.rel (0) target = $region13
    $region12: #{tpu_custom_call.1} parent=1 // pred_region
      %43 = vsyncadd [#allocation9], 0
      %s44 = sshll.u32 %s2, 4
      %s45 = int_to_ptr.hbm [resolvable:$true] %s44
      %s46 = sshll.u32 [#allocation10], 4
      %s47 = int_to_ptr.vmem [resolvable:$true] %s46
      %52 = dma.hbm_to_vmem [thread:$0]  %s45, 384, %s47, [#allocation9], 128, 128, 8
    $region13: #{tpu_custom_call.1} parent=1 // pred_fallthru
      _
    // Predicated region
    $region14: #{tpu_custom_call.1} parent=1 // pred_check
      _
    $region15: #{tpu_custom_call.1} parent=1 // pred_check_branch
      %54 = sbr.rel (0) target = $region17
    $region16: #{tpu_custom_call.1} parent=1 // pred_region
      %56 = vsyncadd [#allocation12], 0
      %s57 = sshll.u32 %s3, 4
      %s58 = int_to_ptr.hbm [resolvable:$true] %s57
      %s59 = sshll.u32 [#allocation11], 4
      %s60 = int_to_ptr.vmem [resolvable:$true] %s59
      %65 = dma.hbm_to_vmem [thread:$0]  %s58, 256, %s60, [#allocation12], 128, 128, 8
    $region17: #{tpu_custom_call.1} parent=1 // pred_fallthru
      _
    // Predicated region
    $region18: #{tpu_custom_call.1} parent=1 // pred_check
      _
    $region19: #{tpu_custom_call.1} parent=1 // pred_check_branch
      %67 = sbr.rel (0) target = $region21
    $region20: #{tpu_custom_call.1} parent=1 // pred_region
      %69 = vsyncadd [#allocation12], 0
      %s70 = sshll.u32 %s4, 4
      %s71 = int_to_ptr.hbm [resolvable:$true] %s70
      %s72 = sshll.u32 [#allocation13], 4
      %s73 = int_to_ptr.vmem [resolvable:$true] %s72
      %78 = dma.hbm_to_vmem [thread:$0]  %s71, 256, %s73, [#allocation12], 128, 128, 8
    $region21: #{tpu_custom_call.1} parent=1 // pred_fallthru
      _
    // Predicated region
    $region22: #{tpu_custom_call.1} parent=1 // pred_check
      _
    $region23: #{tpu_custom_call.1} parent=1 // pred_check_branch
      %80 = sbr.rel (0) target = $region25
    $region24: #{tpu_custom_call.1} parent=1 // pred_region
      %82 = dma.done [#allocation6], 384
    $region25: #{tpu_custom_call.1} parent=1 // pred_fallthru
      _
    // Predicated region
    $region26: #{tpu_custom_call.1} parent=1 // pred_check
      _
    $region27: #{tpu_custom_call.1} parent=1 // pred_check_branch
      %84 = sbr.rel (0) target = $region29
    $region28: #{tpu_custom_call.1} parent=1 // pred_region
      %86 = dma.done [#allocation9], 384
    $region29: #{tpu_custom_call.1} parent=1 // pred_fallthru
      _
    // Predicated region
    $region30: #{tpu_custom_call.1} parent=1 // pred_check
      _
    $region31: #{tpu_custom_call.1} parent=1 // pred_check_branch
      %88 = sbr.rel (0) target = $region33
    $region32: #{tpu_custom_call.1} parent=1 // pred_region
      %90 = dma.done [#allocation9], 384
    $region33: #{tpu_custom_call.1} parent=1 // pred_fallthru
      _
    // Predicated region
    $region34: #{tpu_custom_call.1} parent=1 // pred_check
      _
    $region35: #{tpu_custom_call.1} parent=1 // pred_check_branch
      %92 = sbr.rel (0) target = $region37
    $region36: #{tpu_custom_call.1} parent=1 // pred_region
      %94 = dma.done [#allocation12], 256
    $region37: #{tpu_custom_call.1} parent=1 // pred_fallthru
      _
    // Predicated region
    $region38: #{tpu_custom_call.1} parent=1 // pred_check
      _
    $region39: #{tpu_custom_call.1} parent=1 // pred_check_branch
      %96 = sbr.rel (0) target = $region41
    $region40: #{tpu_custom_call.1} parent=1 // pred_region
      %98 = dma.done [#allocation12], 256
    $region41: #{tpu_custom_call.1} parent=1 // pred_fallthru
      _
    %p99 = scmp.eq.s32.totalorder 0, 0
    // Predicated region
    $region42: #{tpu_custom_call.1} parent=1 // pred_check
      %p100 = pneg %p99
    $region43: #{tpu_custom_call.1} parent=1 // pred_check_branch
      %102 = sbr.rel (%p100) target = $region45
    $region44: #{tpu_custom_call.1} parent=1 // pred_region
      %103 = vst [vmem:[#allocation2] sm:$0xff] 0.0
      %104 = vst [vmem:[#allocation3] sm:$0xff] 0.0
      %105 = vst [vmem:[#allocation4] sm:$0xff] 0.0
    $region45: #{tpu_custom_call.1} parent=1 // pred_fallthru
      _
    %v106 = vld [vmem:[#allocation5] sm:$0xff]
    %v107 = vld [vmem:[#allocation5 + $0x8] sm:$0xff]
    %v108 = vld [vmem:[#allocation5 + $0x10] sm:$0xff]
    %v109 = vld [vmem:[#allocation8] sm:$0xff]
    %v110 = vld [vmem:[#allocation8 + $0x8] sm:$0xff]
    %v111 = vld [vmem:[#allocation8 + $0x10] sm:$0xff]
    %v112 = vld [vmem:[#allocation10] sm:$0xff]
    %v113 = vld [vmem:[#allocation10 + $0x8] sm:$0xff]
    %v114 = vld [vmem:[#allocation10 + $0x10] sm:$0xff]
    %v115 = vld [vmem:[#allocation11] sm:$0xff]
    %v116 = vld [vmem:[#allocation11 + $0x8] sm:$0xff]
    %v117 = vld [vmem:[#allocation13] sm:$0xff]
    %v118 = vld [vmem:[#allocation13 + $0x8] sm:$0x1]
    %v119 = vlaneseq
    %v120 = vand.u32 %v119, 127
    %s121 = smul.u32 0, 128
    %v122 = vstv %s121
    %v123 = vadd.s32 %v120, %v122
    %vm124 = vcmp.lt.s32.totalorder %v123, 2
    %v125 = vadd.f32 %v109, %v112
    %v126 = vadd.f32 %v110, %v113
    %v127 = vadd.f32 %v111, %v114
    %v128 = vrcp.pop %v127
    %v129 = vmul.f32 %v127, %v128
    %v130 = vsub.f32 1.0, %v129
    %v131 = vmul.f32 %v128, %v130
    %v132 = vadd.f32 %v128, %v131
    %vm133 = vweird.f32 %v127
    %vm134 = vweird.f32 %v128
    %vm135 = vmor %vm133, %vm134
    %v136 = vsel %vm135, %v128, %v132
    %v137 = vand.u32 2147483647, %v127
    %vm138 = vcmp.eq.f32.partialorder %v137, 8.507059e+37
    %v139 = vand.u32 %v127, 2147483648
    %v140 = vor.u32 1.1754944e-38, %v139
    %v141 = vsel %vm138, %v140, %v136
    %v142 = vmul.f32 1.0, %v141
    %v143 = vmul.f32 %v125, %v142
    %v144 = vmax.f32 %v143, -1.0
    %v145 = vmin.f32 %v144, 1.0
    %v146 = vmul.f32 %v126, %v142
    %v147 = vmax.f32 %v146, -1.0
    %v148 = vmin.f32 %v147, 1.0
    %v149 = vmul.f32 %v145, %v145
    %v150 = vmul.f32 %v148, %v148
    %v151 = vadd.f32 %v149, %v150
    %v152 = vmul.f32 %v151, %v151
    %v153 = vmul.f32 %v152, %v151
    %v154 = vperm.slane %v117, 4
    %v155 = vmul.f32 %v154, %v151
    %v156 = vadd.f32 %v155, 1.0
    %v157 = vperm.slane %v117, 5
    %v158 = vmul.f32 %v157, %v152
    %v159 = vadd.f32 %v156, %v158
    %v160 = vperm.slane %v117, 6
    %v161 = vmul.f32 %v160, %v153
    %v162 = vadd.f32 %v159, %v161
    %v163 = vperm.slane %v117, 7
    %v164 = vmul.f32 %v163, %v145
    %v165 = vperm.slane %v118, 0
    %v166 = vmul.f32 %v165, %v148
    %v167 = vadd.f32 %v164, %v166
    %v168 = vadd.f32 %v162, %v167
    %v169 = vmul.f32 %v145, %v168
    %v170 = vmul.f32 %v163, %v151
    %v171 = vadd.f32 %v169, %v170
    %v172 = vperm.slane %v117, 0
    %v173 = vmul.f32 %v172, %v171
    %v174 = vperm.slane %v117, 2
    %v175 = vadd.f32 %v173, %v174
    %v176 = vmul.f32 %v148, %v168
    %v177 = vmul.f32 %v165, %v151
    %v178 = vadd.f32 %v176, %v177
    %v179 = vperm.slane %v117, 1
    %v180 = vmul.f32 %v179, %v178
    %v181 = vperm.slane %v117, 3
    %v182 = vadd.f32 %v180, %v181
    %v183 = vsub.f32 %v175, %v115
    %v184 = vsub.f32 %v182, %v116
    %v185 = vmul.f32 %v183, %v183
    %v186 = vmul.f32 %v184, %v184
    %v187 = vadd.f32 %v185, %v186
    %v188 = vrsqrt.pop %v187
    %v189 = vmul.f32 %v188, %v187
    %v190 = vmul.f32 %v189, %v188
    %v191 = vmul.f32 0.5, %v190
    %v192 = vsub.f32 1.5, %v191
    %v193 = vmul.f32 %v188, %v192
    %v194 = vmul.f32 %v187, %v193
    %vm195 = vcmp.eq.f32.partialorder %v187, inf
    %v196 = vsel %vm195, %v187, %v194
    %vm197 = vcmp.eq.f32.partialorder %v187, 0.0
    %v198 = vand.u32 %v187, 2147483648
    %v199 = vsel %vm197, %v198, %v196
    %v200 = vld [vmem:[#allocation2] sm:$0xff]
    %v201 = vsel %vm124, %v199, 0.0
    %v202 = vadd.f32 %v200, %v201
    %203 = vst [vmem:[#allocation2] sm:$0xff] %v202
    %v205 = vrot.slane %v109, 7
    %v207 = vrot.slane %v109, 4
    %vm209 = vcmask 1040384
    %v210 = vsel %vm209, %v109, %v205
    %vm211 = vcmask 1041408
    %v212 = vsel %vm211, %v210, %v205
    %vm213 = vcmask 1042432
    %v214 = vsel %vm213, %v212, %v205
    %vm215 = vcmask 1043456
    %v216 = vsel %vm215, %v214, %v207
    %vm217 = vcmask 1044480
    %v218 = vsel %vm217, %v216, %v205
    %vm219 = vcmask 1045504
    %v220 = vsel %vm219, %v218, %v205
    %vm221 = vcmask 1046528
    %v222 = vsel %vm221, %v220, %v205
    %v223 = vsub.f32 %v109, %v222
    %v224 = vmul.f32 %v223, %v223
    %v226 = vrot.slane %v110, 7
    %v228 = vrot.slane %v110, 4
    %v230 = vsel %vm209, %v110, %v226
    %v231 = vsel %vm211, %v230, %v226
    %v232 = vsel %vm213, %v231, %v226
    %v233 = vsel %vm215, %v232, %v228
    %v234 = vsel %vm217, %v233, %v226
    %v235 = vsel %vm219, %v234, %v226
    %v236 = vsel %vm221, %v235, %v226
    %v237 = vsub.f32 %v110, %v236
    %v238 = vmul.f32 %v237, %v237
    %v239 = vadd.f32 %v224, %v238
    %v241 = vrot.slane %v111, 7
    %v243 = vrot.slane %v111, 4
    %v245 = vsel %vm209, %v111, %v241
    %v246 = vsel %vm211, %v245, %v241
    %v247 = vsel %vm213, %v246, %v241
    %v248 = vsel %vm215, %v247, %v243
    %v249 = vsel %vm217, %v248, %v241
    %v250 = vsel %vm219, %v249, %v241
    %v251 = vsel %vm221, %v250, %v241
    %v252 = vsub.f32 %v111, %v251
    %v253 = vmul.f32 %v252, %v252
    %v254 = vadd.f32 %v239, %v253
    %v255 = vrsqrt.pop %v254
    %v256 = vmul.f32 %v255, %v254
    %v257 = vmul.f32 %v256, %v255
    %v258 = vmul.f32 0.5, %v257
    %v259 = vsub.f32 1.5, %v258
    %v260 = vmul.f32 %v255, %v259
    %v261 = vmul.f32 %v254, %v260
    %vm262 = vcmp.eq.f32.partialorder %v254, inf
    %v263 = vsel %vm262, %v254, %v261
    %vm264 = vcmp.eq.f32.partialorder %v254, 0.0
    %v265 = vand.u32 %v254, 2147483648
    %v266 = vsel %vm264, %v265, %v263
    %v268 = vrot.slane %v106, 7
    %v270 = vrot.slane %v106, 4
    %v272 = vsel %vm209, %v106, %v268
    %v273 = vsel %vm211, %v272, %v268
    %v274 = vsel %vm213, %v273, %v268
    %v275 = vsel %vm215, %v274, %v270
    %v276 = vsel %vm217, %v275, %v268
    %v277 = vsel %vm219, %v276, %v268
    %v278 = vsel %vm221, %v277, %v268
    %v279 = vsub.f32 %v106, %v278
    %v280 = vmul.f32 %v279, %v279
    %v282 = vrot.slane %v107, 7
    %v284 = vrot.slane %v107, 4
    %v286 = vsel %vm209, %v107, %v282
    %v287 = vsel %vm211, %v286, %v282
    %v288 = vsel %vm213, %v287, %v282
    %v289 = vsel %vm215, %v288, %v284
    %v290 = vsel %vm217, %v289, %v282
    %v291 = vsel %vm219, %v290, %v282
    %v292 = vsel %vm221, %v291, %v282
    %v293 = vsub.f32 %v107, %v292
    %v294 = vmul.f32 %v293, %v293
    %v295 = vadd.f32 %v280, %v294
    %v297 = vrot.slane %v108, 7
    %v299 = vrot.slane %v108, 4
    %v301 = vsel %vm209, %v108, %v297
    %v302 = vsel %vm211, %v301, %v297
    %v303 = vsel %vm213, %v302, %v297
    %v304 = vsel %vm215, %v303, %v299
    %v305 = vsel %vm217, %v304, %v297
    %v306 = vsel %vm219, %v305, %v297
    %v307 = vsel %vm221, %v306, %v297
    %v308 = vsub.f32 %v108, %v307
    %v309 = vmul.f32 %v308, %v308
    %v310 = vadd.f32 %v295, %v309
    %v311 = vrsqrt.pop %v310
    %v312 = vmul.f32 %v311, %v310
    %v313 = vmul.f32 %v312, %v311
    %v314 = vmul.f32 0.5, %v313
    %v315 = vsub.f32 1.5, %v314
    %v316 = vmul.f32 %v311, %v315
    %v317 = vmul.f32 %v310, %v316
    %vm318 = vcmp.eq.f32.partialorder %v310, inf
    %v319 = vsel %vm318, %v310, %v317
    %vm320 = vcmp.eq.f32.partialorder %v310, 0.0
    %v321 = vand.u32 %v310, 2147483648
    %v322 = vsel %vm320, %v321, %v319
    %v323 = vld [vmem:[#allocation3] sm:$0xff]
    %v324 = vsel %vm124, %v266, 0.0
    %v325 = vadd.f32 %v323, %v324
    %326 = vst [vmem:[#allocation3] sm:$0xff] %v325
    %v327 = vld [vmem:[#allocation4] sm:$0xff]
    %v328 = vsel %vm124, %v322, 0.0
    %v329 = vadd.f32 %v327, %v328
    %330 = vst [vmem:[#allocation4] sm:$0xff] %v329
    // Predicated region
    $region46: #{tpu_custom_call.1} parent=1 // pred_check
      %p331 = pneg %p99
    $region47: #{tpu_custom_call.1} parent=1 // pred_check_branch
      %333 = sbr.rel (%p331) target = $region49
    $region48: #{tpu_custom_call.1} parent=1 // pred_region
      %v334 = vld [vmem:[#allocation2] sm:$0xff]
      %335 = vadd.xlane.f32.xlu0 %v334
      %v336 = vpop.xlane.xlu0 %335
      %v337 = vrot.slane %v336, 4
      %v338 = vadd.f32 %v336, %v337
      %v339 = vrot.slane %v338, 2
      %v340 = vadd.f32 %v338, %v339
      %v341 = vrot.slane %v340, 1
      %v342 = vadd.f32 %v340, %v341
      %s343 = vtos %v342
      %v344 = vrcp.pop 16.0
      %v345 = vmul.f32 16.0, %v344
      %v346 = vsub.f32 1.0, %v345
      %v347 = vmul.f32 %v344, %v346
      %v348 = vadd.f32 %v344, %v347
      %vm349 = vweird.f32 %v344
      %v350 = vsel %vm349, %v344, %v348
      %s351 = vtos %v350
      %s352 = smul.f32 %s343, %s351
      %v353 = vld [vmem:[#allocation3] sm:$0xff]
      %354 = vadd.xlane.f32.xlu0 %v353
      %v355 = vpop.xlane.xlu0 %354
      %v356 = vld [vmem:[#allocation4] sm:$0xff]
      %357 = vadd.xlane.f32.xlu0 %v356
      %v358 = vpop.xlane.xlu0 %357
      %v359 = vsub.f32 %v355, %v358
      %v360 = vand.u32 2147483647, %v359
      %v361 = vmul.f32 %v360, 0.5
      %vm362 = vcmask 7168
      %v363 = vsel %vm362, %v361, 0.0
      %364 = vadd.xlane.f32.xlu0 %v363
      %v365 = vpop.xlane.xlu0 %364
      %v366 = vrot.slane %v365, 4
      %v367 = vadd.f32 %v365, %v366
      %v368 = vrot.slane %v367, 2
      %v369 = vadd.f32 %v367, %v368
      %v370 = vrot.slane %v369, 1
      %v371 = vadd.f32 %v369, %v370
      %s372 = vtos %v371
      %v373 = vrcp.pop 7.0
      %v374 = vmul.f32 7.0, %v373
      %v375 = vsub.f32 1.0, %v374
      %v376 = vmul.f32 %v373, %v375
      %v377 = vadd.f32 %v373, %v376
      %vm378 = vweird.f32 %v373
      %v379 = vsel %vm378, %v373, %v377
      %s380 = vtos %v379
      %s381 = smul.f32 %s372, %s380
      %vm382 = vcmp.eq.s32.totalorder %v120, 0
      %v383 = vstv %s352
      %v384 = vstv %s381
      %v385 = vsel %vm382, %v383, %v384
      %vm386 = vcmask 8192
      %387 = vst.msk [vmem:[#allocation14] sm:$0x1] %vm386, %v385
    $region49: #{tpu_custom_call.1} parent=1 // pred_fallthru
      _
    // Predicated region
    $region50: #{tpu_custom_call.1} parent=1 // pred_check
      _
    $region51: #{tpu_custom_call.1} parent=1 // pred_check_branch
      %389 = sbr.rel (0) target = $region53
    $region52: #{tpu_custom_call.1} parent=1 // pred_region
      %391 = vsyncadd [#allocation7], 0
      %s393 = sshll.u32 [#allocation14], 4
      %s394 = int_to_ptr.vmem [resolvable:$true] %s393
      %s395 = sshll.u32 %s5, 4
      %s396 = int_to_ptr.hbm [resolvable:$true] %s395
      %398 = dma.vmem_to_hbm [thread:$0]  %s394, 16, %s396, [#allocation7]
    $region53: #{tpu_custom_call.1} parent=1 // pred_fallthru
      _
    // Predicated region
    $region54: #{tpu_custom_call.1} parent=1 // pred_check
      _
    $region55: #{tpu_custom_call.1} parent=1 // pred_check_branch
      %400 = sbr.rel (0) target = $region57
    $region56: #{tpu_custom_call.1} parent=1 // pred_region
      %402 = dma.done [#allocation7], 16
    $region57: #{tpu_custom_call.1} parent=1 // pred_fallthru
      _
    %403 = vsyncpa [#allocation6], 1
    %404 = vsyncpa [#allocation9], 1
    %405 = vsyncpa [#allocation12], 1
    %406 = vsyncpa [#allocation7], 1

</llo_original>
